<compile_context>
chip_gen: v6e
topology: v6e:2x2x1
jax: 0.10.0
libtpu: 0.0.40
codegen_flags: <defaults>
</compile_context>

<pallas_src>
import functools

import jax
import jax.numpy as jnp
import numpy as np
from jax import lax
from jax.experimental import pallas as pl
from jax.experimental.pallas import tpu as pltpu

HIDDEN = 4  # fixed by the module: Linear(channels_num, 4)


def _cdiv(a, b):
    return -(-a // b)


def _row_sum_kernel(x_ref, out_ref, *, hw, thw, num_t):
    """grid = (row_blocks, nsplit, num_t).
    x block  : (R, thw)   — B*C rows on sublanes, spatial tile on lanes (dense DMA).
    out block: (1, R, 1)  — per-row partial spatial SUM for this split, resident across t."""
    s = pl.program_id(1)
    t = pl.program_id(2)

    @pl.when(t == 0)
    def _init():
        out_ref[...] = jnp.zeros_like(out_ref)

    # Intended global spatial offset of this tile (independent of the clamped DMA index).
    start = (s * num_t + t) * thw
    overrun = start + thw > hw  # tile sticks past the true spatial extent (or is fully dead)

    @pl.when(jnp.logical_not(overrun))
    def _full_tile():
        blk = x_ref[...].astype(jnp.float32)           # upcast in VMEM (bf16 inputs stream native)
        out_ref[...] += jnp.sum(blk, axis=-1, keepdims=True)[None]

    @pl.when(overrun)
    def _tail_tile():
        blk = x_ref[...].astype(jnp.float32)
        lane = lax.broadcasted_iota(jnp.int32, blk.shape, 1)
        blk = jnp.where(start + lane < hw, blk, 0.0)   # zero ragged / dead lanes before the sum
        out_ref[...] += jnp.sum(blk, axis=-1, keepdims=True)[None]


def _choose_row_block(n_rows, max_rows=4096):
    """Row (sublane) block: full extent when small, else a divisor (preferably x8) of n_rows."""
    if n_rows <= max_rows:
        return n_rows
    fallback = 1
    for d in range(max_rows, 0, -1):
        if n_rows % d == 0:
            if d % 8 == 0:
                return d
            if fallback == 1:
                fallback = d
    return fallback


def _choose_spatial_tile(rows_padded, hw, itemsize, target_bytes=4 * 1024 * 1024):
    """Lane (spatial) tile: multiple of 128, sized toward ~target_bytes per PADDED block."""
    budget = max(128, (target_bytes // max(1, rows_padded * itemsize)) // 128 * 128)
    cover = _cdiv(hw, 128) * 128
    return min(budget, cover)


def my_channel_attention(x, w1, b1, w2, b2):
    """x: (B, C, H, W).  w1: (4, 1), b1: (4,), w2: (1, 4), b2: (1,)  (PyTorch Linear shapes).
    Returns (C, 1, 1), matching torch.mean(cha_attention, dim=0) for channels_num == 1."""
    B, C, H, W = x.shape
    HW = H * W
    n_rows = B * C

    # Single streaming pass: no pad, no dtype cast — (B*C, HW) is a free reshape of NCHW x.
    x2 = x.reshape(n_rows, HW)
    itemsize = x2.dtype.itemsize

    R = _choose_row_block(n_rows)
    n_row_blocks = n_rows // R
    rows_padded = _cdiv(R, 8) * 8                              # real (8,128) sublane footprint

    thw = _choose_spatial_tile(rows_padded, HW, itemsize)
    total_tiles = _cdiv(HW, thw)
    nsplit = 2 if total_tiles >= 2 else 1                      # keep both v7x TensorCores busy
    num_t = _cdiv(total_tiles, nsplit)
    last_blk = total_tiles - 1                                 # clamp: never a fully-OOB window

    # VMEM budget from the PADDED block, double-buffered, capped well under v7x's 64 MiB.
    in_blk_bytes = rows_padded * thw * itemsize
    vmem_limit = int(min(40 << 20, max(16 << 20, 4 * in_blk_bytes + (2 << 20))))

    kernel = functools.partial(_row_sum_kernel, hw=HW, thw=thw, num_t=num_t)

    partials = pl.pallas_call(
        kernel,
        out_shape=jax.ShapeDtypeStruct((nsplit, n_rows, 1), jnp.float32),
        grid_spec=pltpu.PrefetchScalarGridSpec(
            num_scalar_prefetch=0,
            grid=(n_row_blocks, nsplit, num_t),
            in_specs=[
                pl.BlockSpec(
                    (R, thw),
                    lambda r, s, t: (r, jnp.minimum(s * num_t + t, last_blk)),
                ),
            ],
            out_specs=pl.BlockSpec((1, R, 1), lambda r, s, t: (s, r, 0)),
        ),
        compiler_params=pltpu.CompilerParams(
            dimension_semantics=("parallel", "parallel", "arbitrary"),
            vmem_limit_bytes=vmem_limit,
        ),
    )(x2)                                                      # (nsplit, B*C, 1) partial sums

    pooled = (jnp.sum(partials[:, :, 0], axis=0) * (1.0 / float(HW))).reshape(B, C)
    pooled = pooled.astype(jnp.float32)

    # ---- tiny 1->4->1 MLP + batch mean in plain JAX (must stay per-batch: tanh nonlinear) ----
    w1v = w1.reshape(HIDDEN).astype(jnp.float32)               # Linear(1, 4).weight[:, 0]
    b1v = b1.reshape(HIDDEN).astype(jnp.float32)
    w2v = w2.reshape(HIDDEN).astype(jnp.float32)               # Linear(4, 1).weight[0, :]
    b2s = b2.reshape(()).astype(jnp.float32)

    h = jnp.tanh(pooled[:, :, None] * w1v[None, None, :] + b1v[None, None, :])   # (B, C, 4)
    o = jnp.sum(h * w2v[None, None, :], axis=-1) + b2s                           # (B, C)
    att = jnp.mean(o, axis=0)                                                    # (C,)
    return att.reshape(C, 1, 1)


def reference(x, w1, b1, w2, b2):
    """Pure-JAX transcription of the PyTorch forward (channels_num == 1)."""
    xp = jnp.transpose(x, (0, 1, 3, 2))
    pooled = jnp.mean(xp, axis=(2, 3), keepdims=True)          # (B, C, 1, 1)
    h = jnp.tanh(pooled @ w1.T + b1)                           # (B, C, 1, 4)
    out = h @ w2.T + b2                                        # (B, C, 1, 1)
    return jnp.mean(out, axis=0)                               # (C, 1, 1)


if __name__ == "__main__":
    B, C, H, W = 2, 4, 16, 16
    channels_num = 1  # required for the PyTorch module as written to run (see header comment)

    key = jax.random.PRNGKey(0)
    kx, kw1, kb1, kw2, kb2 = jax.random.split(key, 5)
    x = jax.random.normal(kx, (B, C, H, W), dtype=jnp.float32)
    # Deterministic synthetic params with PyTorch Linear shapes:
    w1 = jax.random.uniform(kw1, (HIDDEN, channels_num), jnp.float32, -1.0, 1.0)  # Linear(1, 4).weight
    b1 = jax.random.uniform(kb1, (HIDDEN,), jnp.float32, -1.0, 1.0)               # Linear(1, 4).bias
    w2 = jax.random.uniform(kw2, (channels_num, HIDDEN), jnp.float32, -1.0, 1.0)  # Linear(4, 1).weight
    b2 = jax.random.uniform(kb2, (channels_num,), jnp.float32, -1.0, 1.0)         # Linear(4, 1).bias

    out = jax.block_until_ready(my_channel_attention(x, w1, b1, w2, b2))
    ref = jax.block_until_ready(reference(x, w1, b1, w2, b2))

    assert out.shape == (C, 1, 1), out.shape
    np.testing.assert_allclose(np.asarray(out), np.asarray(ref), rtol=1e-5, atol=1e-5)
    print("KERNEL_OK")
</pallas_src>

<mosaic_0001>
module attributes {stable_mosaic.version = 11 : i64} {
  func.func @_row_sum_kernel(%arg0: i32, %arg1: i32, %arg2: i32, %arg3: memref<8x256xf32, #tpu.memory_space<vmem>>, %arg4: memref<1x8x1xf32, #tpu.memory_space<vmem>>) attributes {dimension_semantics = [#tpu.dimension_semantics<parallel>, #tpu.dimension_semantics<parallel>, #tpu.dimension_semantics<arbitrary>], iteration_bounds = array<i64: 1, 1, 1>, scalar_prefetch = 0 : i64, scratch_operands = 0 : i64, tpu.core_type = #tpu.core_type<tc>, window_params = [{transform_indices = @transform_0, window_bounds = array<i64: 8, 256>}, {transform_indices = @transform_1, window_bounds = array<i64: 1, 8, 1>}]} {
    %c0_i32 = arith.constant 0 : i32
    %0 = arith.cmpi eq, %arg2, %c0_i32 : i32
    %1 = arith.extui %0 : i1 to i32
    %c0_i32_0 = arith.constant 0 : i32
    %2 = arith.cmpi ne, %1, %c0_i32_0 : i32
    scf.if %2 {
      %cst = arith.constant 0.000000e+00 : f32
      %13 = vector.broadcast %cst : f32 to vector<1x8x1xf32>
      %c0 = arith.constant 0 : index
      %c0_5 = arith.constant 0 : index
      %c0_6 = arith.constant 0 : index
      %14 = vector.load %arg4[%c0, %c0_5, %c0_6] : memref<1x8x1xf32, #tpu.memory_space<vmem>>, vector<1x8x1xf32>
      tpu.vector_store %arg4[%c0, %c0_5, %c0_6], %13 {strides = array<i32>} : memref<1x8x1xf32, #tpu.memory_space<vmem>>, vector<1x8x1xf32>,
    } else {
    }
    %c1_i32 = arith.constant 1 : i32
    %3 = arith.muli %arg1, %c1_i32 : i32
    %4 = arith.addi %3, %arg2 : i32
    %c256_i32 = arith.constant 256 : i32
    %5 = arith.muli %4, %c256_i32 : i32
    %c256_i32_1 = arith.constant 256 : i32
    %6 = arith.addi %5, %c256_i32_1 : i32
    %c256_i32_2 = arith.constant 256 : i32
    %7 = arith.cmpi sgt, %6, %c256_i32_2 : i32
    %true = arith.constant true
    %8 = arith.xori %7, %true : i1
    %9 = arith.extui %8 : i1 to i32
    %c0_i32_3 = arith.constant 0 : i32
    %10 = arith.cmpi ne, %9, %c0_i32_3 : i32
    scf.if %10 {
      %c0 = arith.constant 0 : index
      %c0_5 = arith.constant 0 : index
      %13 = vector.load %arg3[%c0, %c0_5] : memref<8x256xf32, #tpu.memory_space<vmem>>, vector<8x256xf32>
      %c0_6 = arith.constant 0 : index
      %c0_7 = arith.constant 0 : index
      %c0_8 = arith.constant 0 : index
      %14 = vector.load %arg4[%c0_6, %c0_7, %c0_8] : memref<1x8x1xf32, #tpu.memory_space<vmem>>, vector<1x8x1xf32>
      %cst = arith.constant dense<0.000000e+00> : vector<8xf32>
      %15 = vector.multi_reduction <add>, %13, %cst [1] : vector<8x256xf32> to vector<8xf32>
      %16 = vector.shape_cast %15 : vector<8xf32> to vector<8x1xf32>
      %17 = vector.shape_cast %16 : vector<8x1xf32> to vector<1x8x1xf32>
      %18 = arith.addf %14, %17 : vector<1x8x1xf32>
      %c0_9 = arith.constant 0 : index
      %c0_10 = arith.constant 0 : index
      %c0_11 = arith.constant 0 : index
      %19 = vector.load %arg4[%c0_9, %c0_10, %c0_11] : memref<1x8x1xf32, #tpu.memory_space<vmem>>, vector<1x8x1xf32>
      tpu.vector_store %arg4[%c0_9, %c0_10, %c0_11], %18 {strides = array<i32>} : memref<1x8x1xf32, #tpu.memory_space<vmem>>, vector<1x8x1xf32>,
    } else {
    }
    %11 = arith.extui %7 : i1 to i32
    %c0_i32_4 = arith.constant 0 : i32
    %12 = arith.cmpi ne, %11, %c0_i32_4 : i32
    scf.if %12 {
      %c0 = arith.constant 0 : index
      %c0_5 = arith.constant 0 : index
      %13 = vector.load %arg3[%c0, %c0_5] : memref<8x256xf32, #tpu.memory_space<vmem>>, vector<8x256xf32>
      %14 = tpu.iota {dimensions = array<i32: 1>} : vector<8x256xi32>
      %15 = vector.broadcast %5 : i32 to vector<8x256xi32>
      %16 = arith.addi %15, %14 : vector<8x256xi32>
      %c256_i32_6 = arith.constant 256 : i32
      %17 = vector.broadcast %c256_i32_6 : i32 to vector<8x256xi32>
      %18 = arith.cmpi slt, %16, %17 : vector<8x256xi32>
      %cst = arith.constant 0.000000e+00 : f32
      %19 = vector.broadcast %cst : f32 to vector<8x256xf32>
      %20 = arith.select %18, %13, %19 : vector<8x256xi1>, vector<8x256xf32>
      %c0_7 = arith.constant 0 : index
      %c0_8 = arith.constant 0 : index
      %c0_9 = arith.constant 0 : index
      %21 = vector.load %arg4[%c0_7, %c0_8, %c0_9] : memref<1x8x1xf32, #tpu.memory_space<vmem>>, vector<1x8x1xf32>
      %cst_10 = arith.constant dense<0.000000e+00> : vector<8xf32>
      %22 = vector.multi_reduction <add>, %20, %cst_10 [1] : vector<8x256xf32> to vector<8xf32>
      %23 = vector.shape_cast %22 : vector<8xf32> to vector<8x1xf32>
      %24 = vector.shape_cast %23 : vector<8x1xf32> to vector<1x8x1xf32>
      %25 = arith.addf %21, %24 : vector<1x8x1xf32>
      %c0_11 = arith.constant 0 : index
      %c0_12 = arith.constant 0 : index
      %c0_13 = arith.constant 0 : index
      %26 = vector.load %arg4[%c0_11, %c0_12, %c0_13] : memref<1x8x1xf32, #tpu.memory_space<vmem>>, vector<1x8x1xf32>
      tpu.vector_store %arg4[%c0_11, %c0_12, %c0_13], %25 {strides = array<i32>} : memref<1x8x1xf32, #tpu.memory_space<vmem>>, vector<1x8x1xf32>,
    } else {
    }
    return
  }
  func.func @transform_0(%arg0: i32, %arg1: i32, %arg2: i32) -> (i32, i32) {
    %c1_i32 = arith.constant 1 : i32
    %0 = arith.muli %arg1, %c1_i32 : i32
    %1 = arith.addi %0, %arg2 : i32
    %c0_i32 = arith.constant 0 : i32
    %2 = arith.minsi %1, %c0_i32 : i32
    %c0_i32_0 = arith.constant 0 : i32
    return %arg0, %2 : i32, i32
  }
  func.func @transform_1(%arg0: i32, %arg1: i32, %arg2: i32) -> (i32, i32, i32) {
    %c0_i32 = arith.constant 0 : i32
    %c0_i32_0 = arith.constant 0 : i32
    return %arg1, %arg0, %c0_i32 : i32, i32, i32
  }
}

</mosaic_0001>

<llo_original>
// kernel: tpu_custom_call.1
$region0: #{tpu_custom_call.1}
  #allocation0 [shape = 'u32[]', space=smem, size = 0x4, offset = 0x4, fixed_abs, tag = 'smem constant byte address 0x4 - core index']
  #allocation1 [shape = 'u32[144,128]{1,0:T(1,128)}', space=vmem, size = 0x12000, scoped, tag = 'internal scratch']
  %s0 = inlined_call_operand.hbm [shape: f32[8,256], index: 0, kind: input, shape index: {}]
  %s1 = inlined_call_operand.vmem [shape: f32[1,8,1], index: 1, kind: output, shape index: {}]
  %s2 = sld [smem:[#allocation0]]
  $region30: #{tpu_custom_call.1} parent=0
    _
  %s4 = ssub.s32 1, %s2
  %s5 = scalar_select 0, %s4, %s2
  $region1: #{tpu_custom_call.1} parent=0
    #allocation2 [shape = 'u8[8192]{0}', space=vmem, size = 0x2000, scoped, tag = 'input window, operand 0, single buffered']
    #allocation3 [shape = 's32[1]{0}', space=sflag, size = 0x4, scoped, tag = 'scoped memory for tpu_custom_call.1']
    %6 = vsyncpa [#allocation3], 0
    // Predicated region
    $region2: #{tpu_custom_call.1} parent=1 // pred_check
      _
    $region3: #{tpu_custom_call.1} parent=1 // pred_check_branch
      %8 = sbr.rel (0) target = $region5
    $region4: #{tpu_custom_call.1} parent=1 // pred_region
      %s9 = sadd.s32 0, 0
      %p10 = scmp.lt.s32.totalorder %s9, 0
      %s11 = scalar_select %p10, %s9, 0
      %s12 = smul.u32 2, %s11
      %s14 = ssub.s32 256, 256
      %15 = vsyncadd [#allocation3], %s14
      %s16 = smul.addr %s12, 128
      %s17 = scalar_lea.hbm %s0, %s16
      %s19 = sshll.u32 [#allocation2], 4
      %s20 = int_to_ptr.vmem [resolvable:$true] %s19
      %22 = dma.hbm_to_vmem [thread:$0]  %s17, 256, %s20, [#allocation3]
    $region5: #{tpu_custom_call.1} parent=1 // pred_fallthru
      _
    // Predicated region
    $region6: #{tpu_custom_call.1} parent=1 // pred_check
      _
    $region7: #{tpu_custom_call.1} parent=1 // pred_check_branch
      %24 = sbr.rel (0) target = $region9
    $region8: #{tpu_custom_call.1} parent=1 // pred_region
      %25 = dma.done [#allocation3], 256
    $region9: #{tpu_custom_call.1} parent=1 // pred_fallthru
      _
    %s26 = sadd.s32 0, 0
    %p27 = scmp.lt.s32.totalorder %s26, 0
    %s28 = scalar_select %p27, %s26, 0
    %s29 = smul.u32 2, %s28
    %p30 = scmp.eq.s32.totalorder 0, 0
    // Predicated region
    $region10: #{tpu_custom_call.1} parent=1 // pred_check
      %p31 = pneg %p30
    $region11: #{tpu_custom_call.1} parent=1 // pred_check_branch
      %33 = sbr.rel (%p31) target = $region13
    $region12: #{tpu_custom_call.1} parent=1 // pred_region
      %vm34 = vcmask 7168
      %35 = vst.msk [vmem:[%s1] sm:$0xff] %vm34, 0.0
    $region13: #{tpu_custom_call.1} parent=1 // pred_fallthru
      _
    %s36 = sadd.s32 0, 0
    %s37 = smul.u32 %s36, 256
    %s38 = sadd.s32 %s37, 256
    %p39 = scmp.gt.s32.totalorder %s38, 256
    %p40 = scmp.le.s32.totalorder %s38, 256
    // Predicated region
    $region14: #{tpu_custom_call.1} parent=1 // pred_check
      %p41 = pneg %p40
    $region15: #{tpu_custom_call.1} parent=1 // pred_check_branch
      %43 = sbr.rel (%p41) target = $region17
    $region16: #{tpu_custom_call.1} parent=1 // pred_region
      %v44 = vld [vmem:[#allocation2] sm:$0xff]
      %v45 = vld [vmem:[#allocation2 + $0x8] sm:$0xff]
      %v46 = vld [vmem:[%s1] sm:$0xff]
      %v47 = vadd.f32 %v44, %v45
      %48 = vadd.xlane.f32.xlu0 %v47
      %v49 = vpop.xlane.xlu0 %48
      %v50 = vadd.f32 %v46, %v49
      %vm51 = vcmask 7168
      %52 = vst.msk [vmem:[%s1] sm:$0xff] %vm51, %v50
    $region17: #{tpu_custom_call.1} parent=1 // pred_fallthru
      _
    // Predicated region
    $region18: #{tpu_custom_call.1} parent=1 // pred_check
      %p53 = pneg %p39
    $region19: #{tpu_custom_call.1} parent=1 // pred_check_branch
      %55 = sbr.rel (%p53) target = $region21
    $region20: #{tpu_custom_call.1} parent=1 // pred_region
      %v56 = vld [vmem:[#allocation2] sm:$0xff]
      %v57 = vld [vmem:[#allocation2 + $0x8] sm:$0xff]
      %v58 = vlaneseq
      %v59 = vand.u32 %v58, 127
      %v60 = vadd.s32 %v59, 128
      %v61 = vstv %s37
      %v62 = vadd.s32 %v61, %v59
      %v63 = vadd.s32 %v61, %v60
      %vm64 = vcmp.lt.s32.totalorder %v62, 256
      %vm65 = vcmp.lt.s32.totalorder %v63, 256
      %v66 = vsel %vm64, %v56, 0.0
      %v67 = vsel %vm65, %v57, 0.0
      %v68 = vld [vmem:[%s1] sm:$0xff]
      %v69 = vadd.f32 %v66, %v67
      %70 = vadd.xlane.f32.xlu0 %v69
      %v71 = vpop.xlane.xlu0 %70
      %v72 = vadd.f32 %v68, %v71
      %vm73 = vcmask 7168
      %74 = vst.msk [vmem:[%s1] sm:$0xff] %vm73, %v72
    $region21: #{tpu_custom_call.1} parent=1 // pred_fallthru
      _
    // Predicated region
    $region22: #{tpu_custom_call.1} parent=1 // pred_check
      _
    $region23: #{tpu_custom_call.1} parent=1 // pred_check_branch
      %76 = sbr.rel (0) target = $region25
    $region24: #{tpu_custom_call.1} parent=1 // pred_region
      _
    $region25: #{tpu_custom_call.1} parent=1 // pred_fallthru
      _
    // Predicated region
    $region26: #{tpu_custom_call.1} parent=1 // pred_check
      _
    $region27: #{tpu_custom_call.1} parent=1 // pred_check_branch
      %78 = sbr.rel (0) target = $region29
    $region28: #{tpu_custom_call.1} parent=1 // pred_region
      _
    $region29: #{tpu_custom_call.1} parent=1 // pred_fallthru
      _
    %79 = vsyncpa [#allocation3], 1

</llo_original>
